<compile_context>
chip_gen: v5e
topology: v5e:2x2
jax: 0.10.0
libtpu: 0.0.40
codegen_flags: <defaults>
</compile_context>

<pallas_src>
import jax
import jax.numpy as jnp
from jax.experimental import pallas as pl
from jax.experimental.pallas import tpu as pltpu


# ----------------------------------------------------------------------------
# Pallas kernel.
#
#   acc[k, i] += q_i * ( M_ik ? ||x_i - x_ak||^2 : relu(1 - ||x_i - x_ak||^2) )
#
# accumulated over the inner (arbitrary) grid axis; at the last inner step the
# per-split partial  sum_k q_ak * sum_i acc[k, i]  is reduced and stored.
# ----------------------------------------------------------------------------
def _obj_cond_kernel(xT_ref, lbl_ref, qi_ref, xa_ref, qak_ref, out_ref, acc_ref):
    # xT_ref : (D,  TN) f32    node coordinates, N on lanes
    # lbl_ref: (1,  TN) int32  labels, -1 = noise (matches no class)
    # qi_ref : (1,  TN) f32    per-node charge q_i (0 on padded rows)
    # xa_ref : (KP, D)  f32    condensation points (zero-padded classes)
    # qak_ref: (KP, 1)  f32    per-class charge (0 for padded classes)
    # out_ref: (1, 128) f32    lane-dense per-split partial (scalar broadcast)
    # acc_ref: (KP, TN) f32    scratch accumulator (persists across inner axis)
    t = pl.program_id(1)

    @pl.when(t == 0)
    def _init():
        acc_ref[...] = jnp.zeros_like(acc_ref)

    d = xT_ref.shape[0]
    kp, tn = acc_ref.shape

    # Pairwise squared distances, (K sublanes, TN lanes).  D is tiny & static:
    # accumulate per coordinate on the VPU (MXU is the wrong unit here).
    x_diff = jnp.zeros((kp, tn), jnp.float32)
    for di in range(d):
        diff = xT_ref[di:di + 1, :] - xa_ref[:, di:di + 1]   # (1,TN)-(KP,1)->(KP,TN)
        x_diff = x_diff + diff * diff

    x_inv = jnp.maximum(1.0 - x_diff, 0.0)                   # relu(1 - d^2)

    # One-hot membership mask built in-kernel from integer labels.
    kidx = jax.lax.broadcasted_iota(jnp.int32, (kp, tn), 0)  # class index per sublane
    m = lbl_ref[...] == kidx                                 # (KP, TN) bool

    term = jnp.where(m, x_diff, x_inv)                       # attractive / repulsive
    acc_ref[...] += qi_ref[...] * term                       # q_i broadcast over K

    @pl.when(t == pl.num_programs(1) - 1)
    def _finalize():
        prod = acc_ref[...] * qak_ref[...]                   # apply q_ak once
        total = jnp.sum(prod, axis=(0, 1), keepdims=True)    # (1, 1)
        out_ref[...] = jnp.broadcast_to(total, out_ref.shape)


# ----------------------------------------------------------------------------
# Wrapper: per-class reductions / gather + L_beta in plain JAX, L_v in Pallas.
# ----------------------------------------------------------------------------
def obj_condensation_loss(x, beta, y, num_classes, *, S_b=1.0, q_min=0.5,
                          tile_n=8192, num_splits=2):
    assert tile_n % 128 == 0, "tile_n must be a multiple of 128"
    assert num_splits >= 1

    x = x.astype(jnp.float32)
    beta = beta.astype(jnp.float32)
    y = y.astype(jnp.int32)
    n, d = x.shape
    k = int(num_classes)
    kp = ((k + 7) // 8) * 8                                  # pad K to sublane multiple

    noise = (y == -1)

    # Per-class condensation points & charges (tiny O(N*K) glue, XLA fuses it).
    cls = jnp.arange(k, dtype=jnp.int32)[None, :]            # (1, K)
    m_nk = y[:, None] == cls                                 # (N, K) bool, noise -> all False
    beta_ak = jnp.max(jnp.where(m_nk, beta[:, None], 0.0), axis=0)   # (K,)
    q_i = jnp.square(jnp.arctanh(beta)) + q_min              # (N,)
    q_masked = jnp.where(m_nk, q_i[:, None], 0.0)            # (N, K)
    q_ak = jnp.max(q_masked, axis=0)                         # (K,)
    idx_ak = jnp.argmax(q_masked, axis=0)                    # (K,)
    x_a = x[idx_ak]                                          # (K, D) gather

    # Noise term of L_beta: trivial reduction, no reason to burn a kernel stream.
    nb_sum = jnp.sum(jnp.where(noise, beta, 0.0))
    n_b = jnp.sum(noise)

    # ---- kernel inputs: pad N so it divides num_splits * tile_n_eff ---------
    # Adaptive tile: big enough to amortize per-step overhead, capped so small
    # graphs don't pay for huge zero padding.
    per_split = -(-n // num_splits)                          # ceil(n / num_splits)
    tile_n_eff = min(tile_n, ((per_split + 127) // 128) * 128)
    tiles_per_split = -(-per_split // tile_n_eff)
    n_pad = num_splits * tiles_per_split * tile_n_eff
    pad = n_pad - n

    # Padded rows: q_i = 0 and label = -1  =>  zero contribution to L_v.
    xT = jnp.pad(x.T, ((0, 0), (0, pad)))                    # (D, n_pad)
    lbl = jnp.pad(y, (0, pad), constant_values=-1)[None, :]  # (1, n_pad) int32
    qi = jnp.pad(q_i, (0, pad))[None, :]                     # (1, n_pad)
    xa_p = jnp.pad(x_a, ((0, kp - k), (0, 0)))               # (KP, D)
    qak_p = jnp.pad(q_ak, (0, kp - k))[:, None]              # (KP, 1)

    grid = (num_splits, tiles_per_split)

    partials = pl.pallas_call(
        _obj_cond_kernel,
        out_shape=jax.ShapeDtypeStruct((1, num_splits * 128), jnp.float32),
        grid=grid,
        in_specs=[
            pl.BlockSpec((d, tile_n_eff), lambda p, t: (0, p * tiles_per_split + t)),
            pl.BlockSpec((1, tile_n_eff), lambda p, t: (0, p * tiles_per_split + t)),
            pl.BlockSpec((1, tile_n_eff), lambda p, t: (0, p * tiles_per_split + t)),
            pl.BlockSpec((kp, d), lambda p, t: (0, 0)),
            pl.BlockSpec((kp, 1), lambda p, t: (0, 0)),
        ],
        out_specs=pl.BlockSpec((1, 128), lambda p, t: (0, p)),
        scratch_shapes=[pltpu.VMEM((kp, tile_n_eff), jnp.float32)],
        compiler_params=pltpu.CompilerParams(
            dimension_semantics=("parallel", "arbitrary")),
    )(xT, lbl, qi, xa_p, qak_p)

    lv_num = jnp.sum(partials.reshape(num_splits, 128)[:, 0])

    l_beta_1 = jnp.sum(1.0 - beta_ak) / k
    l_beta_2 = S_b / n_b * nb_sum        # matches module: inf if a batch has no noise
    l_v = lv_num / n
    return l_beta_1 + l_beta_2 + l_v


# ----------------------------------------------------------------------------
# Pure-JAX reference (mirrors the PyTorch module) for a correctness check.
# ----------------------------------------------------------------------------
def reference_loss(x, beta, y, num_classes, *, S_b=1.0, q_min=0.5):
    k = int(num_classes)
    n = y.shape[0]
    noise = (y == -1)
    valid = jnp.logical_not(noise)
    m_ik = jnp.where(valid[:, None],
                     jax.nn.one_hot(jnp.where(valid, y, 0), k,
                                    dtype=jnp.float32), 0.0)

    beta_ak = jnp.max(beta[:, None] * m_ik, axis=0)
    n_b = jnp.sum(noise)
    l_beta = jnp.sum(1.0 - beta_ak) / k + S_b / n_b * jnp.sum(
        jnp.where(noise, beta, 0.0))

    q_i = jnp.square(jnp.arctanh(beta)) + q_min
    q_masked = q_i[:, None] * m_ik
    q_ak = jnp.max(q_masked, axis=0)
    idx_ak = jnp.argmax(q_masked, axis=0)
    x_a = x[idx_ak]
    x_diff = jnp.sum(jnp.square(x[:, None, :] - x_a[None, :, :]), axis=2)
    x_inv = jnp.maximum(1.0 - x_diff, 0.0)
    v_a = x_diff * q_ak
    v_r = x_inv * q_ak
    l_v = jnp.sum(jnp.sum(m_ik * v_a + (1.0 - m_ik) * v_r, axis=1) * q_i) / n
    return l_beta + l_v


if __name__ == "__main__":
    key = jax.random.PRNGKey(0)
    k_x, k_b, k_y = jax.random.split(key, 3)

    N, D, K = 3000, 3, 5

    x = jax.random.normal(k_x, (N, D), dtype=jnp.float32)
    # Clamp beta away from 1.0 so arctanh stays finite (matches production use).
    beta = jax.random.uniform(k_b, (N,), dtype=jnp.float32,
                              minval=0.05, maxval=0.95)
    y = jax.random.randint(k_y, (N,), -1, K)
    # Make sure every class 0..K-1 is populated and at least one noise hit.
    y = y.at[:K].set(jnp.arange(K))
    y = y.at[K].set(-1)

    loss = obj_condensation_loss(x, beta, y, K, S_b=1.0, q_min=0.5)
    loss = jax.block_until_ready(loss)

    ref = jax.block_until_ready(reference_loss(x, beta, y, K,
                                               S_b=1.0, q_min=0.5))
    assert jnp.isfinite(loss), "loss is not finite"
    assert jnp.allclose(loss, ref, rtol=5e-4, atol=1e-4), (loss, ref)

    print("KERNEL_OK")
</pallas_src>

<mosaic_0001>
module attributes {stable_mosaic.version = 11 : i64} {
  func.func @_obj_cond_kernel(%arg0: i32, %arg1: i32, %arg2: memref<3x1536xf32, #tpu.memory_space<vmem>>, %arg3: memref<1x1536xi32, #tpu.memory_space<vmem>>, %arg4: memref<1x1536xf32, #tpu.memory_space<vmem>>, %arg5: memref<8x3xf32, #tpu.memory_space<vmem>>, %arg6: memref<8x1xf32, #tpu.memory_space<vmem>>, %arg7: memref<1x128xf32, #tpu.memory_space<vmem>>, %arg8: memref<8x1536xf32, #tpu.memory_space<vmem>>) attributes {dimension_semantics = [#tpu.dimension_semantics<parallel>, #tpu.dimension_semantics<arbitrary>], iteration_bounds = array<i64: 2, 1>, scalar_prefetch = 0 : i64, scratch_operands = 1 : i64, tpu.core_type = #tpu.core_type<tc>, window_params = [{transform_indices = @transform_0, window_bounds = array<i64: 3, 1536>}, {transform_indices = @transform_1, window_bounds = array<i64: 1, 1536>}, {transform_indices = @transform_2, window_bounds = array<i64: 1, 1536>}, {pipeline_mode = #tpu.pipeline_mode<synchronous>, transform_indices = @transform_3, window_bounds = array<i64: 8, 3>}, {pipeline_mode = #tpu.pipeline_mode<synchronous>, transform_indices = @transform_4, window_bounds = array<i64: 8, 1>}, {transform_indices = @transform_5, window_bounds = array<i64: 1, 128>}]} {
    %c0_i32 = arith.constant 0 : i32
    %0 = arith.cmpi eq, %arg1, %c0_i32 : i32
    %1 = arith.extui %0 : i1 to i32
    %c0_i32_0 = arith.constant 0 : i32
    %2 = arith.cmpi ne, %1, %c0_i32_0 : i32
    scf.if %2 {
      %cst_22 = arith.constant 0.000000e+00 : f32
      %43 = vector.broadcast %cst_22 : f32 to vector<8x1536xf32>
      %c0_23 = arith.constant 0 : index
      %c0_24 = arith.constant 0 : index
      %44 = vector.load %arg8[%c0_23, %c0_24] : memref<8x1536xf32, #tpu.memory_space<vmem>>, vector<8x1536xf32>
      tpu.vector_store %arg8[%c0_23, %c0_24], %43 {strides = array<i32>} : memref<8x1536xf32, #tpu.memory_space<vmem>>, vector<8x1536xf32>,
    } else {
    }
    %cst = arith.constant 0.000000e+00 : f32
    %3 = vector.broadcast %cst : f32 to vector<8x1536xf32>
    %c0 = arith.constant 0 : index
    %c0_1 = arith.constant 0 : index
    %4 = vector.load %arg2[%c0, %c0_1] : memref<3x1536xf32, #tpu.memory_space<vmem>>, vector<1x1536xf32>
    %c0_2 = arith.constant 0 : index
    %c0_3 = arith.constant 0 : index
    %5 = vector.load %arg5[%c0_2, %c0_3] : memref<8x3xf32, #tpu.memory_space<vmem>>, vector<8x1xf32>
    %6 = vector.broadcast %4 : vector<1x1536xf32> to vector<8x1536xf32>
    %7 = vector.broadcast %5 : vector<8x1xf32> to vector<8x1536xf32>
    %8 = arith.subf %6, %7 : vector<8x1536xf32>
    %9 = arith.mulf %8, %8 : vector<8x1536xf32>
    %10 = arith.addf %3, %9 : vector<8x1536xf32>
    %c1 = arith.constant 1 : index
    %c0_4 = arith.constant 0 : index
    %11 = vector.load %arg2[%c1, %c0_4] : memref<3x1536xf32, #tpu.memory_space<vmem>>, vector<1x1536xf32>
    %c0_5 = arith.constant 0 : index
    %c1_6 = arith.constant 1 : index
    %12 = vector.load %arg5[%c0_5, %c1_6] : memref<8x3xf32, #tpu.memory_space<vmem>>, vector<8x1xf32>
    %13 = vector.broadcast %11 : vector<1x1536xf32> to vector<8x1536xf32>
    %14 = vector.broadcast %12 : vector<8x1xf32> to vector<8x1536xf32>
    %15 = arith.subf %13, %14 : vector<8x1536xf32>
    %16 = arith.mulf %15, %15 : vector<8x1536xf32>
    %17 = arith.addf %10, %16 : vector<8x1536xf32>
    %c2 = arith.constant 2 : index
    %c0_7 = arith.constant 0 : index
    %18 = vector.load %arg2[%c2, %c0_7] : memref<3x1536xf32, #tpu.memory_space<vmem>>, vector<1x1536xf32>
    %c0_8 = arith.constant 0 : index
    %c2_9 = arith.constant 2 : index
    %19 = vector.load %arg5[%c0_8, %c2_9] : memref<8x3xf32, #tpu.memory_space<vmem>>, vector<8x1xf32>
    %20 = vector.broadcast %18 : vector<1x1536xf32> to vector<8x1536xf32>
    %21 = vector.broadcast %19 : vector<8x1xf32> to vector<8x1536xf32>
    %22 = arith.subf %20, %21 : vector<8x1536xf32>
    %23 = arith.mulf %22, %22 : vector<8x1536xf32>
    %24 = arith.addf %17, %23 : vector<8x1536xf32>
    %cst_10 = arith.constant 1.000000e+00 : f32
    %25 = vector.broadcast %cst_10 : f32 to vector<8x1536xf32>
    %26 = arith.subf %25, %24 : vector<8x1536xf32>
    %cst_11 = arith.constant 0.000000e+00 : f32
    %27 = vector.broadcast %cst_11 : f32 to vector<8x1536xf32>
    %28 = arith.maximumf %26, %27 : vector<8x1536xf32>
    %29 = tpu.iota {dimensions = array<i32: 0>} : vector<8x1536xi32>
    %c0_12 = arith.constant 0 : index
    %c0_13 = arith.constant 0 : index
    %30 = vector.load %arg3[%c0_12, %c0_13] : memref<1x1536xi32, #tpu.memory_space<vmem>>, vector<1x1536xi32>
    %31 = vector.broadcast %30 : vector<1x1536xi32> to vector<8x1536xi32>
    %32 = arith.cmpi eq, %31, %29 : vector<8x1536xi32>
    %33 = arith.select %32, %24, %28 : vector<8x1536xi1>, vector<8x1536xf32>
    %c0_14 = arith.constant 0 : index
    %c0_15 = arith.constant 0 : index
    %34 = vector.load %arg8[%c0_14, %c0_15] : memref<8x1536xf32, #tpu.memory_space<vmem>>, vector<8x1536xf32>
    %c0_16 = arith.constant 0 : index
    %c0_17 = arith.constant 0 : index
    %35 = vector.load %arg4[%c0_16, %c0_17] : memref<1x1536xf32, #tpu.memory_space<vmem>>, vector<1x1536xf32>
    %36 = vector.broadcast %35 : vector<1x1536xf32> to vector<8x1536xf32>
    %37 = arith.mulf %36, %33 : vector<8x1536xf32>
    %38 = arith.addf %34, %37 : vector<8x1536xf32>
    %c0_18 = arith.constant 0 : index
    %c0_19 = arith.constant 0 : index
    %39 = vector.load %arg8[%c0_18, %c0_19] : memref<8x1536xf32, #tpu.memory_space<vmem>>, vector<8x1536xf32>
    tpu.vector_store %arg8[%c0_18, %c0_19], %38 {strides = array<i32>} : memref<8x1536xf32, #tpu.memory_space<vmem>>, vector<8x1536xf32>,
    %c0_i32_20 = arith.constant 0 : i32
    %40 = arith.cmpi eq, %arg1, %c0_i32_20 : i32
    %41 = arith.extui %40 : i1 to i32
    %c0_i32_21 = arith.constant 0 : i32
    %42 = arith.cmpi ne, %41, %c0_i32_21 : i32
    scf.if %42 {
      %c0_22 = arith.constant 0 : index
      %c0_23 = arith.constant 0 : index
      %43 = vector.load %arg8[%c0_22, %c0_23] : memref<8x1536xf32, #tpu.memory_space<vmem>>, vector<8x1536xf32>
      %c0_24 = arith.constant 0 : index
      %c0_25 = arith.constant 0 : index
      %44 = vector.load %arg6[%c0_24, %c0_25] : memref<8x1xf32, #tpu.memory_space<vmem>>, vector<8x1xf32>
      %45 = vector.broadcast %44 : vector<8x1xf32> to vector<8x1536xf32>
      %46 = arith.mulf %43, %45 : vector<8x1536xf32>
      %47 = vector.shape_cast %46 : vector<8x1536xf32> to vector<1x8x1536xf32>
      %cst_26 = arith.constant dense<0.000000e+00> : vector<1xf32>
      %48 = vector.multi_reduction <add>, %47, %cst_26 [1, 2] : vector<1x8x1536xf32> to vector<1xf32>
      %49 = vector.shape_cast %48 : vector<1xf32> to vector<1x1x1xf32>
      %50 = vector.extract %49[0, 0, 0] : f32 from vector<1x1x1xf32>
      %51 = vector.broadcast %50 : f32 to vector<1x1xf32>
      %52 = vector.shape_cast %51 : vector<1x1xf32> to vector<1x1xf32>
      %53 = vector.broadcast %52 : vector<1x1xf32> to vector<1x128xf32>
      %c0_27 = arith.constant 0 : index
      %c0_28 = arith.constant 0 : index
      %54 = vector.load %arg7[%c0_27, %c0_28] : memref<1x128xf32, #tpu.memory_space<vmem>>, vector<1x128xf32>
      tpu.vector_store %arg7[%c0_27, %c0_28], %53 {strides = array<i32>} : memref<1x128xf32, #tpu.memory_space<vmem>>, vector<1x128xf32>,
    } else {
    }
    return
  }
  func.func @transform_0(%arg0: i32, %arg1: i32) -> (i32, i32) {
    %c1_i32 = arith.constant 1 : i32
    %0 = arith.muli %arg0, %c1_i32 : i32
    %1 = arith.addi %0, %arg1 : i32
    %c0_i32 = arith.constant 0 : i32
    %c0_i32_0 = arith.constant 0 : i32
    return %c0_i32, %1 : i32, i32
  }
  func.func @transform_1(%arg0: i32, %arg1: i32) -> (i32, i32) {
    %c1_i32 = arith.constant 1 : i32
    %0 = arith.muli %arg0, %c1_i32 : i32
    %1 = arith.addi %0, %arg1 : i32
    %c0_i32 = arith.constant 0 : i32
    %c0_i32_0 = arith.constant 0 : i32
    return %c0_i32, %1 : i32, i32
  }
  func.func @transform_2(%arg0: i32, %arg1: i32) -> (i32, i32) {
    %c1_i32 = arith.constant 1 : i32
    %0 = arith.muli %arg0, %c1_i32 : i32
    %1 = arith.addi %0, %arg1 : i32
    %c0_i32 = arith.constant 0 : i32
    %c0_i32_0 = arith.constant 0 : i32
    return %c0_i32, %1 : i32, i32
  }
  func.func @transform_3(%arg0: i32, %arg1: i32) -> (i32, i32) {
    %c0_i32 = arith.constant 0 : i32
    %c0_i32_0 = arith.constant 0 : i32
    %c0_i32_1 = arith.constant 0 : i32
    return %c0_i32, %c0_i32_0 : i32, i32
  }
  func.func @transform_4(%arg0: i32, %arg1: i32) -> (i32, i32) {
    %c0_i32 = arith.constant 0 : i32
    %c0_i32_0 = arith.constant 0 : i32
    %c0_i32_1 = arith.constant 0 : i32
    return %c0_i32, %c0_i32_0 : i32, i32
  }
  func.func @transform_5(%arg0: i32, %arg1: i32) -> (i32, i32) {
    %c0_i32 = arith.constant 0 : i32
    %c0_i32_0 = arith.constant 0 : i32
    return %c0_i32, %arg0 : i32, i32
  }
}

</mosaic_0001>

<llo_original>
// kernel: tpu_custom_call.1
$region0: #{tpu_custom_call.1}
  #allocation0 [shape = 'u32[]', space=smem, size = 0x4, offset = 0x4, fixed_abs, tag = 'smem constant byte address 0x4 - core index']
  #allocation1 [shape = 'u32[72,128]{1,0:T(1,128)}', space=vmem, size = 0x9000, scoped, tag = 'internal scratch']
  #allocation2 [shape = 'f32[8,1536]{1,0:T(8,128)}', space=vmem, size = 0xc000, scoped, tag = 'scratch operand']
  %s0 = inlined_call_operand.hbm [shape: f32[3,3072], index: 0, kind: input, shape index: {}]
  %s1 = inlined_call_operand.hbm [shape: s32[1,3072], index: 1, kind: input, shape index: {}]
  %s2 = inlined_call_operand.hbm [shape: f32[1,3072], index: 2, kind: input, shape index: {}]
  %s3 = inlined_call_operand.vmem [shape: f32[8,3], index: 3, kind: input, shape index: {}]
  %s4 = inlined_call_operand.vmem [shape: f32[8,1], index: 4, kind: input, shape index: {}]
  %s5 = inlined_call_operand.hbm [shape: f32[1,256], index: 5, kind: output, shape index: {}]
  %s6 = sld [smem:[#allocation0]]
  $region73: #{tpu_custom_call.1} parent=0
    _
  %s8 = ssub.s32 1, %s6
  %s9 = scalar_select 0, %s8, %s6
  $region1: #{tpu_custom_call.1} parent=0
    #allocation3 [shape = 'u8[49152]{0}', space=vmem, size = 0xc000, scoped, tag = 'input window, operand 0']
    #allocation4 [shape = 's32[2]{0}', space=sflag, size = 0x8, scoped, tag = 'scoped memory for tpu_custom_call.1']
    #allocation5 [shape = 's32[2]{0}', space=sflag, size = 0x8, scoped, tag = 'scoped memory for tpu_custom_call.1']
    #allocation6 [shape = 'u8[12288]{0}', space=vmem, size = 0x3000, scoped, tag = 'input window, operand 1']
    #allocation7 [shape = 's32[2]{0}', space=sflag, size = 0x8, scoped, tag = 'scoped memory for tpu_custom_call.1']
    #allocation8 [shape = 'u8[12288]{0}', space=vmem, size = 0x3000, scoped, tag = 'input window, operand 2']
    #allocation9 [shape = 'u8[1024]{0}', space=vmem, size = 0x400, scoped, tag = 'output window, operand 0']
    %10 = vsyncpa [#allocation4], 0
    %s11 = scalar_lea.sflag [#allocation4], 1
    %12 = vsyncpa %s11, 0
    %13 = vsyncpa [#allocation7], 0
    %s14 = scalar_lea.sflag [#allocation7], 1
    %15 = vsyncpa %s14, 0
    %16 = vsyncpa [#allocation5], 0
    %s17 = scalar_lea.sflag [#allocation5], 1
    %18 = vsyncpa %s17, 0
    loop: start=0, step=1, limit=4
    $region2: #{tpu_custom_call.1} parent=1 // loop_pre_header
      _
    $region3: #{tpu_custom_call.1} parent=1 // loop_header
      %s20 = sphi 0, %s24
      %p21 = scmp.ge.s32.totalorder %s20, 4
      %s27 = sphi 0, %s39
      %s28 = sphi 0, %s35
      %s29 = sphi 0, %s27
      %s30 = sphi 0, %s28
      %s31 = sphi 0, %s29
      %s32 = sphi 0, %s30
      %s44 = sphi 0, %s46
      %s47 = sphi 0, %s44
      %s48 = sphi 0, %s47
      %s64 = sphi 0, %s48
      %s72 = sphi 0, %s74
      %s75 = sphi 0, %s72
      %s76 = sphi 0, %s75
      %s92 = sphi 0, %s76
      %s100 = sphi 0, %s102
      %s103 = sphi 0, %s100
      %s104 = sphi 0, %s103
      %s120 = sphi 0, %s104
      %s124 = sphi 0, %s124
      %s126 = sphi 0, %s124
      %s127 = sphi 0, %s126
      %s141 = sphi 0, %s127
      %s145 = sphi 0, %s145
      %s147 = sphi 0, %s145
      %s148 = sphi 0, %s147
      %s162 = sphi 0, %s148
      %s168 = sphi 0, %s170
      %s171 = sphi 0, %s168
      %s172 = sphi 0, %s171
      %s188 = sphi 0, %s172
    $region4: #{tpu_custom_call.1} parent=1 // loop_header_branch
      %23 = sbr.rel (%p21) target = $region8
    $region5: #{tpu_custom_call.1} parent=1 // loop_body
      %s25 = ssub.s32 %s20, 1
      %s26 = ssub.s32 %s20, 2
      %s33 = sadd.s32 1, %s28
      %p34 = scmp.ge.s32.totalorder %s33, 1
      %s35 = scalar_select %p34, 0, %s33
      %s36 = sadd.s32 1, %s27
      %s37 = scalar_select %p34, %s36, %s27
      %p38 = scmp.ge.s32.totalorder %s37, 2
      %s39 = scalar_select %p38, 0, %s37
      %s40 = sadd.s32 %s27, %s28
      %s41 = sadd.s32 %s39, %s35
      %s42 = ssub.s32 %s40, %s41
      %p43 = scmp.eq.s32.totalorder %s42, 0
      %s45 = sadd.s32 %s44, 1
      %s46 = scalar_select %p43, %s44, %s45
      %p49 = pneg %p43
      %p50 = scmp.eq.s32.totalorder %s20, 1
      %p51 = por %p49, %p50
      %p52 = scmp.ne.s32.totalorder %s44, %s47
      %p53 = scmp.eq.s32.totalorder %s20, 0
      %p54 = por %p52, %p53
      %p55 = scmp.ne.s32.totalorder %s44, %s47
      %p56 = scmp.eq.s32.totalorder %s25, 1
      %p57 = por %p55, %p56
      %p58 = scmp.ne.s32.totalorder %s47, %s48
      %p59 = scmp.eq.s32.totalorder %s25, 0
      %p60 = por %p58, %p59
      %p61 = scmp.ne.s32.totalorder %s47, %s48
      %p62 = scmp.eq.s32.totalorder %s26, 1
      %p63 = por %p61, %p62
      %p65 = scmp.ne.s32.totalorder %s48, %s64
      %p66 = scmp.eq.s32.totalorder %s26, 0
      %p67 = por %p65, %p66
      %s68 = sadd.s32 %s27, %s28
      %s69 = sadd.s32 %s39, %s35
      %s70 = ssub.s32 %s68, %s69
      %p71 = scmp.eq.s32.totalorder %s70, 0
      %s73 = sadd.s32 %s72, 1
      %s74 = scalar_select %p71, %s72, %s73
      %p77 = pneg %p71
      %p78 = scmp.eq.s32.totalorder %s20, 1
      %p79 = por %p77, %p78
      %p80 = scmp.ne.s32.totalorder %s72, %s75
      %p81 = scmp.eq.s32.totalorder %s20, 0
      %p82 = por %p80, %p81
      %p83 = scmp.ne.s32.totalorder %s72, %s75
      %p84 = scmp.eq.s32.totalorder %s25, 1
      %p85 = por %p83, %p84
      %p86 = scmp.ne.s32.totalorder %s75, %s76
      %p87 = scmp.eq.s32.totalorder %s25, 0
      %p88 = por %p86, %p87
      %p89 = scmp.ne.s32.totalorder %s75, %s76
      %p90 = scmp.eq.s32.totalorder %s26, 1
      %p91 = por %p89, %p90
      %p93 = scmp.ne.s32.totalorder %s76, %s92
      %p94 = scmp.eq.s32.totalorder %s26, 0
      %p95 = por %p93, %p94
      %s96 = sadd.s32 %s27, %s28
      %s97 = sadd.s32 %s39, %s35
      %s98 = ssub.s32 %s96, %s97
      %p99 = scmp.eq.s32.totalorder %s98, 0
      %s101 = sadd.s32 %s100, 1
      %s102 = scalar_select %p99, %s100, %s101
      %p105 = pneg %p99
      %p106 = scmp.eq.s32.totalorder %s20, 1
      %p107 = por %p105, %p106
      %p108 = scmp.ne.s32.totalorder %s100, %s103
      %p109 = scmp.eq.s32.totalorder %s20, 0
      %p110 = por %p108, %p109
      %p111 = scmp.ne.s32.totalorder %s100, %s103
      %p112 = scmp.eq.s32.totalorder %s25, 1
      %p113 = por %p111, %p112
      %p114 = scmp.ne.s32.totalorder %s103, %s104
      %p115 = scmp.eq.s32.totalorder %s25, 0
      %p116 = por %p114, %p115
      %p117 = scmp.ne.s32.totalorder %s103, %s104
      %p118 = scmp.eq.s32.totalorder %s26, 1
      %p119 = por %p117, %p118
      %p121 = scmp.ne.s32.totalorder %s104, %s120
      %p122 = scmp.eq.s32.totalorder %s26, 0
      %p123 = por %p121, %p122
      %s125 = sadd.s32 %s124, 1
      %p128 = scmp.eq.s32.totalorder %s20, 1
      %p129 = scmp.ne.s32.totalorder %s124, %s126
      %p130 = scmp.eq.s32.totalorder %s20, 0
      %p131 = por %p129, %p130
      %p132 = scmp.ne.s32.totalorder %s124, %s126
      %p133 = scmp.eq.s32.totalorder %s25, 1
      %p134 = por %p132, %p133
      %p135 = scmp.ne.s32.totalorder %s126, %s127
      %p136 = scmp.eq.s32.totalorder %s25, 0
      %p137 = por %p135, %p136
      %p138 = scmp.ne.s32.totalorder %s126, %s127
      %p139 = scmp.eq.s32.totalorder %s26, 1
      %p140 = por %p138, %p139
      %p142 = scmp.ne.s32.totalorder %s127, %s141
      %p143 = scmp.eq.s32.totalorder %s26, 0
      %p144 = por %p142, %p143
      %s146 = sadd.s32 %s145, 1
      %p149 = scmp.eq.s32.totalorder %s20, 1
      %p150 = scmp.ne.s32.totalorder %s145, %s147
      %p151 = scmp.eq.s32.totalorder %s20, 0
      %p152 = por %p150, %p151
      %p153 = scmp.ne.s32.totalorder %s145, %s147
      %p154 = scmp.eq.s32.totalorder %s25, 1
      %p155 = por %p153, %p154
      %p156 = scmp.ne.s32.totalorder %s147, %s148
      %p157 = scmp.eq.s32.totalorder %s25, 0
      %p158 = por %p156, %p157
      %p159 = scmp.ne.s32.totalorder %s147, %s148
      %p160 = scmp.eq.s32.totalorder %s26, 1
      %p161 = por %p159, %p160
      %p163 = scmp.ne.s32.totalorder %s148, %s162
      %p164 = scmp.eq.s32.totalorder %s26, 0
      %p165 = por %p163, %p164
      %s166 = ssub.s32 %s27, %s39
      %p167 = scmp.eq.s32.totalorder %s166, 0
      %s169 = sadd.s32 %s168, 1
      %s170 = scalar_select %p167, %s168, %s169
      %p173 = pneg %p167
      %p174 = scmp.eq.s32.totalorder %s20, 1
      %p175 = por %p173, %p174
      %p176 = scmp.ne.s32.totalorder %s168, %s171
      %p177 = scmp.eq.s32.totalorder %s20, 0
      %p178 = por %p176, %p177
      %p179 = scmp.ne.s32.totalorder %s168, %s171
      %p180 = scmp.eq.s32.totalorder %s25, 1
      %p181 = por %p179, %p180
      %p182 = scmp.ne.s32.totalorder %s171, %s172
      %p183 = scmp.eq.s32.totalorder %s25, 0
      %p184 = por %p182, %p183
      %p185 = scmp.ne.s32.totalorder %s171, %s172
      %p186 = scmp.eq.s32.totalorder %s26, 1
      %p187 = por %p185, %p186
      %p189 = scmp.ne.s32.totalorder %s172, %s188
      %p190 = scmp.eq.s32.totalorder %s26, 0
      %p191 = por %p189, %p190
      %p192 = scmp.le.s32.totalorder 1, %s20
      %p193 = scmp.lt.s32.totalorder %s20, 3
      %p194 = pnand %p192, %p193
      %p195 = pneg %p194
      // Predicated region
      $region9: #{tpu_custom_call.1} parent=5 // pred_check
        _
      $region10: #{tpu_custom_call.1} parent=5 // pred_check_branch
        %197 = sbr.rel (%p194) target = $region12
      $region11: #{tpu_custom_call.1} parent=5 // pred_region
        %s198 = ssub.s32 %s20, 1
        // Predicated region
        $region13: #{tpu_custom_call.1} parent=11 // pred_check
          %p199 = pneg %p137
        $region14: #{tpu_custom_call.1} parent=11 // pred_check_branch
          %201 = sbr.rel (%p199) target = $region16
        $region15: #{tpu_custom_call.1} parent=11 // pred_region
          _
        $region16: #{tpu_custom_call.1} parent=11 // pred_fallthru
          _
        // Predicated region
        $region17: #{tpu_custom_call.1} parent=11 // pred_check
          %p202 = pneg %p158
        $region18: #{tpu_custom_call.1} parent=11 // pred_check_branch
          %204 = sbr.rel (%p202) target = $region20
        $region19: #{tpu_custom_call.1} parent=11 // pred_region
          _
        $region20: #{tpu_custom_call.1} parent=11 // pred_fallthru
          _
      $region12: #{tpu_custom_call.1} parent=5 // pred_fallthru
        _
      %p205 = scmp.lt.s32.totalorder %s20, 2
      // Predicated region
      $region21: #{tpu_custom_call.1} parent=5 // pred_check
        %p206 = pneg %p205
      $region22: #{tpu_custom_call.1} parent=5 // pred_check_branch
        %208 = sbr.rel (%p206) target = $region24
      $region23: #{tpu_custom_call.1} parent=5 // pred_region
        // Predicated region
        $region25: #{tpu_custom_call.1} parent=23 // pred_check
          %p209 = pneg %p54
        $region26: #{tpu_custom_call.1} parent=23 // pred_check_branch
          %211 = sbr.rel (%p209) target = $region28
        $region27: #{tpu_custom_call.1} parent=23 // pred_region
          %s212 = sand.u32 %s44, 1
          %s213 = scalar_lea.sflag [#allocation4], %s212
          %s214 = sand.u32 %s44, 1
          %s215 = smul.addr %s214, 48
          %s216 = scalar_lea.vmem [#allocation3], %s215
          %s217 = sadd.s32 %s27, %s28
          %s218 = smul.u32 12, %s217
          %220 = vsyncadd %s213, 0
          %s221 = smul.addr %s218, 4
          %s222 = scalar_lea.hbm %s0, %s221
          %s224 = sshll.u32 %s222, 4
          %s225 = int_to_ptr.hbm [resolvable:$true] %s224
          %s226 = sshll.u32 %s216, 4
          %s227 = int_to_ptr.vmem [resolvable:$true] %s226
          %229 = dma.hbm_to_vmem [thread:$0]  %s225, 768, %s227, %s213
        $region28: #{tpu_custom_call.1} parent=23 // pred_fallthru
          _
        // Predicated region
        $region29: #{tpu_custom_call.1} parent=23 // pred_check
          %p230 = pneg %p82
        $region30: #{tpu_custom_call.1} parent=23 // pred_check_branch
          %232 = sbr.rel (%p230) target = $region32
        $region31: #{tpu_custom_call.1} parent=23 // pred_region
          %s233 = sand.u32 %s20, 1
          %s234 = scalar_lea.sflag [#allocation7], %s233
          %s235 = sand.u32 %s72, 1
          %s236 = smul.addr %s235, 12
          %s237 = scalar_lea.vmem [#allocation6], %s236
          %s238 = sadd.s32 %s27, %s28
          %s239 = smul.u32 12, %s238
          %241 = vsyncadd %s234, 0
          %s242 = scalar_lea.hbm %s1, %s239
          %s244 = sshll.u32 %s242, 4
          %s245 = int_to_ptr.hbm [resolvable:$true] %s244
          %s246 = sshll.u32 %s237, 4
          %s247 = int_to_ptr.vmem [resolvable:$true] %s246
          %249 = dma.hbm_to_vmem [thread:$0]  %s245, 192, %s247, %s234
        $region32: #{tpu_custom_call.1} parent=23 // pred_fallthru
          _
        // Predicated region
        $region33: #{tpu_custom_call.1} parent=23 // pred_check
          %p250 = pneg %p110
        $region34: #{tpu_custom_call.1} parent=23 // pred_check_branch
          %252 = sbr.rel (%p250) target = $region36
        $region35: #{tpu_custom_call.1} parent=23 // pred_region
          %s253 = sand.u32 %s20, 1
          %s254 = scalar_lea.sflag [#allocation7], %s253
          %s255 = sand.u32 %s100, 1
          %s256 = smul.addr %s255, 12
          %s257 = scalar_lea.vmem [#allocation8], %s256
          %s258 = sadd.s32 %s27, %s28
          %s259 = smul.u32 12, %s258
          %261 = vsyncadd %s254, 0
          %s262 = scalar_lea.hbm %s2, %s259
          %s264 = sshll.u32 %s262, 4
          %s265 = int_to_ptr.hbm [resolvable:$true] %s264
          %s266 = sshll.u32 %s257, 4
          %s267 = int_to_ptr.vmem [resolvable:$true] %s266
          %269 = dma.hbm_to_vmem [thread:$0]  %s265, 192, %s267, %s254
        $region36: #{tpu_custom_call.1} parent=23 // pred_fallthru
          _
      $region24: #{tpu_custom_call.1} parent=5 // pred_fallthru
        _
      %p270 = scmp.le.s32.totalorder 1, %s20
      %p271 = scmp.lt.s32.totalorder %s20, 3
      %p272 = pnand %p270, %p271
      %p273 = pneg %p272
      // Predicated region
      $region37: #{tpu_custom_call.1} parent=5 // pred_check
        _
      $region38: #{tpu_custom_call.1} parent=5 // pred_check_branch
        %275 = sbr.rel (%p272) target = $region40
      $region39: #{tpu_custom_call.1} parent=5 // pred_region
        %s276 = ssub.s32 %s20, 1
        %s277 = sand.u32 %s47, 1
        %s278 = scalar_lea.sflag [#allocation4], %s277
        %s279 = sand.u32 %s47, 1
        %s280 = smul.addr %s279, 48
        %s281 = scalar_lea.vmem [#allocation3], %s280
        // Predicated region
        $region41: #{tpu_custom_call.1} parent=39 // pred_check
          %p282 = pneg %p60
        $region42: #{tpu_custom_call.1} parent=39 // pred_check_branch
          %284 = sbr.rel (%p282) target = $region44
        $region43: #{tpu_custom_call.1} parent=39 // pred_region
          %286 = dma.done %s278, 768
        $region44: #{tpu_custom_call.1} parent=39 // pred_fallthru
          _
        %s287 = sand.u32 %s25, 1
        %s288 = scalar_lea.sflag [#allocation7], %s287
        %s289 = sand.u32 %s75, 1
        %s290 = smul.addr %s289, 12
        %s291 = scalar_lea.vmem [#allocation6], %s290
        // Predicated region
        $region45: #{tpu_custom_call.1} parent=39 // pred_check
          %p292 = pneg %p88
        $region46: #{tpu_custom_call.1} parent=39 // pred_check_branch
          %294 = sbr.rel (%p292) target = $region48
        $region47: #{tpu_custom_call.1} parent=39 // pred_region
          %296 = dma.done %s288, 192
        $region48: #{tpu_custom_call.1} parent=39 // pred_fallthru
          _
        %s297 = sand.u32 %s25, 1
        %s298 = scalar_lea.sflag [#allocation7], %s297
        %s299 = sand.u32 %s103, 1
        %s300 = smul.addr %s299, 12
        %s301 = scalar_lea.vmem [#allocation8], %s300
        // Predicated region
        $region49: #{tpu_custom_call.1} parent=39 // pred_check
          %p302 = pneg %p116
        $region50: #{tpu_custom_call.1} parent=39 // pred_check_branch
          %304 = sbr.rel (%p302) target = $region52
        $region51: #{tpu_custom_call.1} parent=39 // pred_region
          %306 = dma.done %s298, 192
        $region52: #{tpu_custom_call.1} parent=39 // pred_fallthru
          _
        %s307 = sand.u32 %s47, 1
        %s308 = scalar_lea.sflag [#allocation4], %s307
        %s309 = sand.u32 %s47, 1
        %s310 = smul.addr %s309, 48
        %s311 = scalar_lea.vmem [#allocation3], %s310
        %p312 = pneg %p60
        %p313 = pneg %p57
        %s314 = sand.u32 %s25, 1
        %s315 = scalar_lea.sflag [#allocation7], %s314
        %s316 = sand.u32 %s75, 1
        %s317 = smul.addr %s316, 12
        %s318 = scalar_lea.vmem [#allocation6], %s317
        %p319 = pneg %p88
        %p320 = pneg %p85
        %s321 = sand.u32 %s25, 1
        %s322 = scalar_lea.sflag [#allocation7], %s321
        %s323 = sand.u32 %s103, 1
        %s324 = smul.addr %s323, 12
        %s325 = scalar_lea.vmem [#allocation8], %s324
        %p326 = pneg %p116
        %p327 = pneg %p113
        %p328 = pneg %p137
        %p329 = pneg %p134
        %p330 = pneg %p158
        %p331 = pneg %p155
        %p332 = pneg %p184
        %p333 = pneg %p181
        %s334 = sand.u32 %s171, 1
        %s335 = scalar_lea.sflag [#allocation5], %s334
        %s336 = sand.u32 %s171, 1
        %s337 = scalar_lea.vmem [#allocation9], %s336
        %s338 = sadd.s32 %s29, %s30
        %s339 = smul.u32 12, %s338
        %s340 = sadd.s32 %s29, %s30
        %s341 = smul.u32 12, %s340
        %s342 = sadd.s32 %s29, %s30
        %s343 = smul.u32 12, %s342
        %p344 = scmp.eq.s32.totalorder %s30, 0
        // Predicated region
        $region53: #{tpu_custom_call.1} parent=39 // pred_check
          %p345 = pneg %p344
        $region54: #{tpu_custom_call.1} parent=39 // pred_check_branch
          %347 = sbr.rel (%p345) target = $region56
        $region55: #{tpu_custom_call.1} parent=39 // pred_region
          %348 = vst [vmem:[#allocation2] sm:$0xff] 0.0
          %349 = vst [vmem:[#allocation2 + $0x8] sm:$0xff] 0.0
          %350 = vst [vmem:[#allocation2 + $0x10] sm:$0xff] 0.0
          %351 = vst [vmem:[#allocation2 + $0x18] sm:$0xff] 0.0
          %352 = vst [vmem:[#allocation2 + $0x20] sm:$0xff] 0.0
          %353 = vst [vmem:[#allocation2 + $0x28] sm:$0xff] 0.0
          %354 = vst [vmem:[#allocation2 + $0x30] sm:$0xff] 0.0
          %355 = vst [vmem:[#allocation2 + $0x38] sm:$0xff] 0.0
          %356 = vst [vmem:[#allocation2 + $0x40] sm:$0xff] 0.0
          %357 = vst [vmem:[#allocation2 + $0x48] sm:$0xff] 0.0
          %358 = vst [vmem:[#allocation2 + $0x50] sm:$0xff] 0.0
          %359 = vst [vmem:[#allocation2 + $0x58] sm:$0xff] 0.0
        $region56: #{tpu_custom_call.1} parent=39 // pred_fallthru
          _
        %v360 = vld [vmem:[%s281] ss:$4 sm:$0xff]
        %s361 = scalar_lea.vmem %s281, 32 [#allocation3]
        %v362 = vld [vmem:[%s361] ss:$4 sm:$0xf]
        %v363 = vld [vmem:[%s3] sm:$0xff]
        %v366 = vperm.slane %v360, 0
        %v367 = vperm.slane %v360, 1
        %v368 = vperm.slane %v360, 2
        %v369 = vperm.slane %v360, 3
        %v370 = vperm.slane %v360, 4
        %v371 = vperm.slane %v360, 5
        %v372 = vperm.slane %v360, 6
        %v373 = vperm.slane %v360, 7
        %v374 = vperm.slane %v362, 0
        %v375 = vperm.slane %v362, 1
        %v376 = vperm.slane %v362, 2
        %v377 = vperm.slane %v362, 3
        %391 = vset.pattern.permute.xlu0 0
        %392 = vperm.xlu0 %391, %v363
        %v393 = vpop.permute.xlu0 %392
        %v395 = vsub.f32 %v366, %v393
        %v396 = vsub.f32 %v367, %v393
        %v397 = vsub.f32 %v368, %v393
        %v398 = vsub.f32 %v369, %v393
        %v399 = vsub.f32 %v370, %v393
        %v400 = vsub.f32 %v371, %v393
        %v401 = vsub.f32 %v372, %v393
        %v402 = vsub.f32 %v373, %v393
        %v403 = vsub.f32 %v374, %v393
        %v404 = vsub.f32 %v375, %v393
        %v405 = vsub.f32 %v376, %v393
        %v406 = vsub.f32 %v377, %v393
        %v407 = vmul.f32 %v395, %v395
        %v408 = vmul.f32 %v396, %v396
        %v409 = vmul.f32 %v397, %v397
        %v410 = vmul.f32 %v398, %v398
        %v411 = vmul.f32 %v399, %v399
        %v412 = vmul.f32 %v400, %v400
        %v413 = vmul.f32 %v401, %v401
        %v414 = vmul.f32 %v402, %v402
        %v415 = vmul.f32 %v403, %v403
        %v416 = vmul.f32 %v404, %v404
        %v417 = vmul.f32 %v405, %v405
        %v418 = vmul.f32 %v406, %v406
        %v419 = vadd.f32 %v407, 0.0
        %v420 = vadd.f32 %v408, 0.0
        %v421 = vadd.f32 %v409, 0.0
        %v422 = vadd.f32 %v410, 0.0
        %v423 = vadd.f32 %v411, 0.0
        %v424 = vadd.f32 %v412, 0.0
        %v425 = vadd.f32 %v413, 0.0
        %v426 = vadd.f32 %v414, 0.0
        %v427 = vadd.f32 %v415, 0.0
        %v428 = vadd.f32 %v416, 0.0
        %v429 = vadd.f32 %v417, 0.0
        %v430 = vadd.f32 %v418, 0.0
        %s431 = scalar_lea.vmem %s281, 1 [#allocation3]
        %v432 = vld [vmem:[%s431] ss:$4 sm:$0xff]
        %s433 = scalar_lea.vmem %s281, 33 [#allocation3]
        %v434 = vld [vmem:[%s433] ss:$4 sm:$0xf]
        %v437 = vperm.slane %v432, 0
        %v438 = vperm.slane %v432, 1
        %v439 = vperm.slane %v432, 2
        %v440 = vperm.slane %v432, 3
        %v441 = vperm.slane %v432, 4
        %v442 = vperm.slane %v432, 5
        %v443 = vperm.slane %v432, 6
        %v444 = vperm.slane %v432, 7
        %v445 = vperm.slane %v434, 0
        %v446 = vperm.slane %v434, 1
        %v447 = vperm.slane %v434, 2
        %v448 = vperm.slane %v434, 3
        %461 = vset.pattern.permute.xlu0 1
        %462 = vperm.xlu0 %461, %v363
        %v463 = vpop.permute.xlu0 %462
        %v465 = vsub.f32 %v437, %v463
        %v466 = vsub.f32 %v438, %v463
        %v467 = vsub.f32 %v439, %v463
        %v468 = vsub.f32 %v440, %v463
        %v469 = vsub.f32 %v441, %v463
        %v470 = vsub.f32 %v442, %v463
        %v471 = vsub.f32 %v443, %v463
        %v472 = vsub.f32 %v444, %v463
        %v473 = vsub.f32 %v445, %v463
        %v474 = vsub.f32 %v446, %v463
        %v475 = vsub.f32 %v447, %v463
        %v476 = vsub.f32 %v448, %v463
        %v477 = vmul.f32 %v465, %v465
        %v478 = vmul.f32 %v466, %v466
        %v479 = vmul.f32 %v467, %v467
        %v480 = vmul.f32 %v468, %v468
        %v481 = vmul.f32 %v469, %v469
        %v482 = vmul.f32 %v470, %v470
        %v483 = vmul.f32 %v471, %v471
        %v484 = vmul.f32 %v472, %v472
        %v485 = vmul.f32 %v473, %v473
        %v486 = vmul.f32 %v474, %v474
        %v487 = vmul.f32 %v475, %v475
        %v488 = vmul.f32 %v476, %v476
        %v489 = vadd.f32 %v419, %v477
        %v490 = vadd.f32 %v420, %v478
        %v491 = vadd.f32 %v421, %v479
        %v492 = vadd.f32 %v422, %v480
        %v493 = vadd.f32 %v423, %v481
        %v494 = vadd.f32 %v424, %v482
        %v495 = vadd.f32 %v425, %v483
        %v496 = vadd.f32 %v426, %v484
        %v497 = vadd.f32 %v427, %v485
        %v498 = vadd.f32 %v428, %v486
        %v499 = vadd.f32 %v429, %v487
        %v500 = vadd.f32 %v430, %v488
        %s501 = scalar_lea.vmem %s281, 2 [#allocation3]
        %v502 = vld [vmem:[%s501] ss:$4 sm:$0xff]
        %s503 = scalar_lea.vmem %s281, 34 [#allocation3]
        %v504 = vld [vmem:[%s503] ss:$4 sm:$0xf]
        %v507 = vperm.slane %v502, 0
        %v508 = vperm.slane %v502, 1
        %v509 = vperm.slane %v502, 2
        %v510 = vperm.slane %v502, 3
        %v511 = vperm.slane %v502, 4
        %v512 = vperm.slane %v502, 5
        %v513 = vperm.slane %v502, 6
        %v514 = vperm.slane %v502, 7
        %v515 = vperm.slane %v504, 0
        %v516 = vperm.slane %v504, 1
        %v517 = vperm.slane %v504, 2
        %v518 = vperm.slane %v504, 3
        %531 = vset.pattern.permute.xlu0 2
        %532 = vperm.xlu0 %531, %v363
        %v533 = vpop.permute.xlu0 %532
        %v535 = vsub.f32 %v507, %v533
        %v536 = vsub.f32 %v508, %v533
        %v537 = vsub.f32 %v509, %v533
        %v538 = vsub.f32 %v510, %v533
        %v539 = vsub.f32 %v511, %v533
        %v540 = vsub.f32 %v512, %v533
        %v541 = vsub.f32 %v513, %v533
        %v542 = vsub.f32 %v514, %v533
        %v543 = vsub.f32 %v515, %v533
        %v544 = vsub.f32 %v516, %v533
        %v545 = vsub.f32 %v517, %v533
        %v546 = vsub.f32 %v518, %v533
        %v547 = vmul.f32 %v535, %v535
        %v548 = vmul.f32 %v536, %v536
        %v549 = vmul.f32 %v537, %v537
        %v550 = vmul.f32 %v538, %v538
        %v551 = vmul.f32 %v539, %v539
        %v552 = vmul.f32 %v540, %v540
        %v553 = vmul.f32 %v541, %v541
        %v554 = vmul.f32 %v542, %v542
        %v555 = vmul.f32 %v543, %v543
        %v556 = vmul.f32 %v544, %v544
        %v557 = vmul.f32 %v545, %v545
        %v558 = vmul.f32 %v546, %v546
        %v559 = vadd.f32 %v489, %v547
        %v560 = vadd.f32 %v490, %v548
        %v561 = vadd.f32 %v491, %v549
        %v562 = vadd.f32 %v492, %v550
        %v563 = vadd.f32 %v493, %v551
        %v564 = vadd.f32 %v494, %v552
        %v565 = vadd.f32 %v495, %v553
        %v566 = vadd.f32 %v496, %v554
        %v567 = vadd.f32 %v497, %v555
        %v568 = vadd.f32 %v498, %v556
        %v569 = vadd.f32 %v499, %v557
        %v570 = vadd.f32 %v500, %v558
        %v571 = vsub.f32 1.0, %v559
        %v572 = vsub.f32 1.0, %v560
        %v573 = vsub.f32 1.0, %v561
        %v574 = vsub.f32 1.0, %v562
        %v575 = vsub.f32 1.0, %v563
        %v576 = vsub.f32 1.0, %v564
        %v577 = vsub.f32 1.0, %v565
        %v578 = vsub.f32 1.0, %v566
        %v579 = vsub.f32 1.0, %v567
        %v580 = vsub.f32 1.0, %v568
        %v581 = vsub.f32 1.0, %v569
        %v582 = vsub.f32 1.0, %v570
        %v583 = vmax.f32 %v571, 0.0
        %v584 = vmax.f32 %v572, 0.0
        %v585 = vmax.f32 %v573, 0.0
        %v586 = vmax.f32 %v574, 0.0
        %v587 = vmax.f32 %v575, 0.0
        %v588 = vmax.f32 %v576, 0.0
        %v589 = vmax.f32 %v577, 0.0
        %v590 = vmax.f32 %v578, 0.0
        %v591 = vmax.f32 %v579, 0.0
        %v592 = vmax.f32 %v580, 0.0
        %v593 = vmax.f32 %v581, 0.0
        %v594 = vmax.f32 %v582, 0.0
        %v595 = vlaneseq
        %v596 = vshrl.u32 %v595, 7
        %v597 = vld [vmem:[%s291] sm:$0xff]
        %v598 = vld [vmem:[%s291 + $0x8] sm:$0xf]
        %v599 = vperm.slane %v597, 0
        %v600 = vperm.slane %v597, 1
        %v601 = vperm.slane %v597, 2
        %v602 = vperm.slane %v597, 3
        %v603 = vperm.slane %v597, 4
        %v604 = vperm.slane %v597, 5
        %v605 = vperm.slane %v597, 6
        %v606 = vperm.slane %v597, 7
        %v607 = vperm.slane %v598, 0
        %v608 = vperm.slane %v598, 1
        %v609 = vperm.slane %v598, 2
        %v610 = vperm.slane %v598, 3
        %vm611 = vcmp.eq.s32.totalorder %v599, %v596
        %vm612 = vcmp.eq.s32.totalorder %v600, %v596
        %vm613 = vcmp.eq.s32.totalorder %v601, %v596
        %vm614 = vcmp.eq.s32.totalorder %v602, %v596
        %vm615 = vcmp.eq.s32.totalorder %v603, %v596
        %vm616 = vcmp.eq.s32.totalorder %v604, %v596
        %vm617 = vcmp.eq.s32.totalorder %v605, %v596
        %vm618 = vcmp.eq.s32.totalorder %v606, %v596
        %vm619 = vcmp.eq.s32.totalorder %v607, %v596
        %vm620 = vcmp.eq.s32.totalorder %v608, %v596
        %vm621 = vcmp.eq.s32.totalorder %v609, %v596
        %vm622 = vcmp.eq.s32.totalorder %v610, %v596
        %v623 = vsel %vm611, %v559, %v583
        %v624 = vsel %vm612, %v560, %v584
        %v625 = vsel %vm613, %v561, %v585
        %v626 = vsel %vm614, %v562, %v586
        %v627 = vsel %vm615, %v563, %v587
        %v628 = vsel %vm616, %v564, %v588
        %v629 = vsel %vm617, %v565, %v589
        %v630 = vsel %vm618, %v566, %v590
        %v631 = vsel %vm619, %v567, %v591
        %v632 = vsel %vm620, %v568, %v592
        %v633 = vsel %vm621, %v569, %v593
        %v634 = vsel %vm622, %v570, %v594
        %v635 = vld [vmem:[#allocation2] sm:$0xff]
        %v636 = vld [vmem:[#allocation2 + $0x8] sm:$0xff]
        %v637 = vld [vmem:[#allocation2 + $0x10] sm:$0xff]
        %v638 = vld [vmem:[#allocation2 + $0x18] sm:$0xff]
        %v639 = vld [vmem:[#allocation2 + $0x20] sm:$0xff]
        %v640 = vld [vmem:[#allocation2 + $0x28] sm:$0xff]
        %v641 = vld [vmem:[#allocation2 + $0x30] sm:$0xff]
        %v642 = vld [vmem:[#allocation2 + $0x38] sm:$0xff]
        %v643 = vld [vmem:[#allocation2 + $0x40] sm:$0xff]
        %v644 = vld [vmem:[#allocation2 + $0x48] sm:$0xff]
        %v645 = vld [vmem:[#allocation2 + $0x50] sm:$0xff]
        %v646 = vld [vmem:[#allocation2 + $0x58] sm:$0xff]
        %v647 = vld [vmem:[%s301] sm:$0xff]
        %v648 = vld [vmem:[%s301 + $0x8] sm:$0xf]
        %v651 = vperm.slane %v647, 0
        %v652 = vperm.slane %v647, 1
        %v653 = vperm.slane %v647, 2
        %v654 = vperm.slane %v647, 3
        %v655 = vperm.slane %v647, 4
        %v656 = vperm.slane %v647, 5
        %v657 = vperm.slane %v647, 6
        %v658 = vperm.slane %v647, 7
        %v659 = vperm.slane %v648, 0
        %v660 = vperm.slane %v648, 1
        %v661 = vperm.slane %v648, 2
        %v662 = vperm.slane %v648, 3
        %v675 = vmul.f32 %v651, %v623
        %v676 = vmul.f32 %v652, %v624
        %v677 = vmul.f32 %v653, %v625
        %v678 = vmul.f32 %v654, %v626
        %v679 = vmul.f32 %v655, %v627
        %v680 = vmul.f32 %v656, %v628
        %v681 = vmul.f32 %v657, %v629
        %v682 = vmul.f32 %v658, %v630
        %v683 = vmul.f32 %v659, %v631
        %v684 = vmul.f32 %v660, %v632
        %v685 = vmul.f32 %v661, %v633
        %v686 = vmul.f32 %v662, %v634
        %v687 = vadd.f32 %v635, %v675
        %v688 = vadd.f32 %v636, %v676
        %v689 = vadd.f32 %v637, %v677
        %v690 = vadd.f32 %v638, %v678
        %v691 = vadd.f32 %v639, %v679
        %v692 = vadd.f32 %v640, %v680
        %v693 = vadd.f32 %v641, %v681
        %v694 = vadd.f32 %v642, %v682
        %v695 = vadd.f32 %v643, %v683
        %v696 = vadd.f32 %v644, %v684
        %v697 = vadd.f32 %v645, %v685
        %v698 = vadd.f32 %v646, %v686
        %699 = vst [vmem:[#allocation2] sm:$0xff] %v687
        %700 = vst [vmem:[#allocation2 + $0x8] sm:$0xff] %v688
        %701 = vst [vmem:[#allocation2 + $0x10] sm:$0xff] %v689
        %702 = vst [vmem:[#allocation2 + $0x18] sm:$0xff] %v690
        %703 = vst [vmem:[#allocation2 + $0x20] sm:$0xff] %v691
        %704 = vst [vmem:[#allocation2 + $0x28] sm:$0xff] %v692
        %705 = vst [vmem:[#allocation2 + $0x30] sm:$0xff] %v693
        %706 = vst [vmem:[#allocation2 + $0x38] sm:$0xff] %v694
        %707 = vst [vmem:[#allocation2 + $0x40] sm:$0xff] %v695
        %708 = vst [vmem:[#allocation2 + $0x48] sm:$0xff] %v696
        %709 = vst [vmem:[#allocation2 + $0x50] sm:$0xff] %v697
        %710 = vst [vmem:[#allocation2 + $0x58] sm:$0xff] %v698
        // Predicated region
        $region57: #{tpu_custom_call.1} parent=39 // pred_check
          %p711 = pneg %p344
        $region58: #{tpu_custom_call.1} parent=39 // pred_check_branch
          %713 = sbr.rel (%p711) target = $region60
        $region59: #{tpu_custom_call.1} parent=39 // pred_region
          %v714 = vld [vmem:[#allocation2] sm:$0xff]
          %v715 = vld [vmem:[#allocation2 + $0x8] sm:$0xff]
          %v716 = vld [vmem:[#allocation2 + $0x10] sm:$0xff]
          %v717 = vld [vmem:[#allocation2 + $0x18] sm:$0xff]
          %v718 = vld [vmem:[#allocation2 + $0x20] sm:$0xff]
          %v719 = vld [vmem:[#allocation2 + $0x28] sm:$0xff]
          %v720 = vld [vmem:[#allocation2 + $0x30] sm:$0xff]
          %v721 = vld [vmem:[#allocation2 + $0x38] sm:$0xff]
          %v722 = vld [vmem:[#allocation2 + $0x40] sm:$0xff]
          %v723 = vld [vmem:[#allocation2 + $0x48] sm:$0xff]
          %v724 = vld [vmem:[#allocation2 + $0x50] sm:$0xff]
          %v725 = vld [vmem:[#allocation2 + $0x58] sm:$0xff]
          %v726 = vld [vmem:[%s4] sm:$0xff]
          %728 = vset.pattern.permute.xlu0 0
          %729 = vperm.xlu0 %728, %v726
          %v730 = vpop.permute.xlu0 %729
          %v732 = vmul.f32 %v714, %v730
          %v733 = vmul.f32 %v715, %v730
          %v734 = vmul.f32 %v716, %v730
          %v735 = vmul.f32 %v717, %v730
          %v736 = vmul.f32 %v718, %v730
          %v737 = vmul.f32 %v719, %v730
          %v738 = vmul.f32 %v720, %v730
          %v739 = vmul.f32 %v721, %v730
          %v740 = vmul.f32 %v722, %v730
          %v741 = vmul.f32 %v723, %v730
          %v742 = vmul.f32 %v724, %v730
          %v743 = vmul.f32 %v725, %v730
          %v744 = vadd.f32 %v732, %v733
          %v745 = vadd.f32 %v744, %v734
          %v746 = vadd.f32 %v745, %v735
          %v747 = vadd.f32 %v746, %v736
          %v748 = vadd.f32 %v747, %v737
          %v749 = vadd.f32 %v748, %v738
          %v750 = vadd.f32 %v749, %v739
          %v751 = vadd.f32 %v750, %v740
          %v752 = vadd.f32 %v751, %v741
          %v753 = vadd.f32 %v752, %v742
          %v754 = vadd.f32 %v753, %v743
          %755 = vadd.xlane.f32.xlu0 %v754
          %v756 = vpop.xlane.xlu0 %755
          %v757 = vrot.slane %v756, 4
          %v758 = vadd.f32 %v756, %v757
          %v759 = vrot.slane %v758, 2
          %v760 = vadd.f32 %v758, %v759
          %v761 = vrot.slane %v760, 1
          %v762 = vadd.f32 %v760, %v761
          %s763 = vtos %v762
          %v764 = vstv %s763
          %765 = vst [vmem:[%s337] sm:$0x1] %v764
        $region60: #{tpu_custom_call.1} parent=39 // pred_fallthru
          _
        %s766 = sand.u32 %s171, 1
        %s767 = scalar_lea.sflag [#allocation5], %s766
        %s768 = sand.u32 %s171, 1
        %s769 = scalar_lea.vmem [#allocation9], %s768
        // Predicated region
        $region61: #{tpu_custom_call.1} parent=39 // pred_check
          %p770 = pneg %p181
        $region62: #{tpu_custom_call.1} parent=39 // pred_check_branch
          %772 = sbr.rel (%p770) target = $region64
        $region63: #{tpu_custom_call.1} parent=39 // pred_region
          %774 = vsyncadd %s767, 0
          %s775 = scalar_lea.hbm %s5, %s29
          %s777 = sshll.u32 %s769, 4
          %s778 = int_to_ptr.vmem [resolvable:$true] %s777
          %s779 = sshll.u32 %s775, 4
          %s780 = int_to_ptr.hbm [resolvable:$true] %s779
          %782 = dma.vmem_to_hbm [thread:$0]  %s778, 16, %s780, %s767
        $region64: #{tpu_custom_call.1} parent=39 // pred_fallthru
          _
      $region40: #{tpu_custom_call.1} parent=5 // pred_fallthru
        _
      %p783 = scmp.le.s32.totalorder 2, %s20
      // Predicated region
      $region65: #{tpu_custom_call.1} parent=5 // pred_check
        %p784 = pneg %p783
      $region66: #{tpu_custom_call.1} parent=5 // pred_check_branch
        %786 = sbr.rel (%p784) target = $region68
      $region67: #{tpu_custom_call.1} parent=5 // pred_region
        %s787 = ssub.s32 %s20, 2
        // Predicated region
        $region69: #{tpu_custom_call.1} parent=67 // pred_check
          %p788 = pneg %p187
        $region70: #{tpu_custom_call.1} parent=67 // pred_check_branch
          %790 = sbr.rel (%p788) target = $region72
        $region71: #{tpu_custom_call.1} parent=67 // pred_region
          %s791 = sand.u32 %s172, 1
          %s792 = scalar_lea.sflag [#allocation5], %s791
          %s793 = sand.u32 %s172, 1
          %s794 = scalar_lea.vmem [#allocation9], %s793
          %796 = dma.done %s792, 16
        $region72: #{tpu_custom_call.1} parent=67 // pred_fallthru
          _
      $region68: #{tpu_custom_call.1} parent=5 // pred_fallthru
        _
    $region6: #{tpu_custom_call.1} parent=1 // loop_footer
      %s24 = sadd.s32 1, %s20
    $region7: #{tpu_custom_call.1} parent=1 // loop_footer_branch
      %19 = sbr.rel target = $region3
    $region8: #{tpu_custom_call.1} parent=1 // loop_exit
      _
    %797 = vsyncpa [#allocation4], 1
    %s798 = scalar_lea.sflag [#allocation4], 1
    %799 = vsyncpa %s798, 1
    %800 = vsyncpa [#allocation7], 1
    %s801 = scalar_lea.sflag [#allocation7], 1
    %802 = vsyncpa %s801, 1
    %803 = vsyncpa [#allocation5], 1
    %s804 = scalar_lea.sflag [#allocation5], 1
    %805 = vsyncpa %s804, 1

</llo_original>
